<compile_context>
chip_gen: v6e
topology: v6e:2x2x1
jax: 0.10.0
libtpu: 0.0.40
codegen_flags: <defaults>
</compile_context>

<pallas_src>
import functools

import jax
import jax.numpy as jnp
from jax.experimental import pallas as pl
from jax.experimental.pallas import tpu as pltpu


# Lane-dense path is used for 4 <= n <= this bound; the constant selection
# matrices cost ~3 * n^3 * 4 bytes of VMEM, so keep n modest.
_LANE_DENSE_MAX_N = 64


def _vmem_budget():
    """(target output-block bytes, vmem_limit_bytes) for the current TPU gen."""
    try:
        vmem_physical = int(pltpu.get_tpu_info().vmem_capacity_bytes)
    except Exception:  # unknown backend / API change -> stay conservative
        vmem_physical = None
    if vmem_physical is not None and vmem_physical > 96 * 1024 * 1024:
        # v5e / v6e: 128 MiB physical VMEM -> bigger tiles, higher scoped limit.
        return 8 * 1024 * 1024, 64 * 1024 * 1024
    # v7x (64 MiB physical per TensorCore) or unknown generation.
    return 6 * 1024 * 1024, 48 * 1024 * 1024


def _pick_block_b(target_rows, B):
    # scores/sorted blocks are 2-D (block_b, ...): the second-to-last block dim
    # must be a multiple of 8 unless it equals the full batch dim.
    if target_rows >= B:
        return B
    b = max(8, (target_rows // 8) * 8)
    return B if b >= B else b


def _pick_block_i(target_rows, n):
    # The sorted block's last dim must be a multiple of 128 unless it equals n.
    if target_rows >= n:
        return n
    bi = max(128, (target_rows // 128) * 128)
    return n if bi >= n else bi


# --------------------------- generic (3-D) path -----------------------------


def _softsort_kernel(scores_ref, sorted_ref, out_ref, *, neg_inv_tau):
    """One (Bt, bi, n) output block; softmax over the last (j) axis."""
    s = scores_ref[...].astype(jnp.float32)      # (Bt, n)   original order
    srt = sorted_ref[...].astype(jnp.float32)    # (Bt, bi)  this tile of ranks
    diff = s[:, None, :] - srt[:, :, None]       # (Bt, bi, n)
    # INVARIANT: sorted values are bitwise copies of score elements (the same
    # f32 array, sorted in the wrapper), so every row's max logit is exactly 0
    # -> exp() never overflows and no max-subtraction is needed.
    out_ref[...] = jnp.exp(diff * diff * neg_inv_tau).astype(out_ref.dtype)
    # Re-read exp from the output block instead of keeping a second full-size
    # VMEM temporary alive (live VMEM ~= the double-buffered output block).
    e = out_ref[...].astype(jnp.float32)
    denom = jnp.sum(e, axis=-1, keepdims=True)   # (Bt, bi, 1); always >= 1.0
    inv = pl.reciprocal(denom, approx=False)     # exact; EUP, off the hot slot
    out_ref[...] = (e * inv).astype(out_ref.dtype)


# ------------------------- lane-dense small-n path --------------------------


def _bf16x3(x):
    """3-way split of f32 into bf16-representable f32 parts (sum == x to ~2^-26)."""
    hi = x.astype(jnp.bfloat16).astype(jnp.float32)
    r = x - hi
    mid = r.astype(jnp.bfloat16).astype(jnp.float32)
    lo = r - mid
    return hi, mid, lo


def _select_dot(x, sel):
    """x @ sel at full f32 accuracy even if the MXU contracts in bf16.

    `sel` is a 0/1 selection matrix (exact in bf16); `x` is split into three
    bf16-representable parts so every MXU pass is lossless regardless of the
    dot's contraction precision.  The MXU is otherwise idle in this kernel, so
    the extra passes are free filler.
    """
    hi, mid, lo = _bf16x3(x)
    dot = lambda p: jnp.dot(p, sel, preferred_element_type=jnp.float32)
    return dot(hi) + dot(mid) + dot(lo)


def _softsort_lane_dense_kernel(scores_ref, sorted_ref, expand_ref, tile_ref,
                                gather_ref, out_ref, *, neg_inv_tau):
    """Small-n path: lane-dense (Bt, n*n) output; MXU does the segmented sums."""
    s = scores_ref[...].astype(jnp.float32)      # (Bt, n)
    srt = sorted_ref[...].astype(jnp.float32)    # (Bt, n)
    E = expand_ref[...]                          # (n, n*n): E[i, i*n + j] = 1
    T = tile_ref[...]                            # (n, n*n): T[j, i*n + j] = 1
    G = gather_ref[...]                          # (n*n, n) = E.T
    s_rep = _select_dot(s, T)                    # [:, i*n+j] = s[:, j]
    srt_rep = _select_dot(srt, E)                # [:, i*n+j] = srt[:, i]
    d = s_rep - srt_rep
    # Same invariant as the generic path: every softmax row's max logit is 0.
    e = jnp.exp(d * d * neg_inv_tau)             # (Bt, n*n)
    denom = _select_dot(e, G)                    # (Bt, n): segmented row sums
    inv = pl.reciprocal(denom, approx=False)
    inv_rep = _select_dot(inv, E)                # broadcast 1/denom back per rank
    out_ref[...] = (e * inv_rep).astype(out_ref.dtype)


# --------------------------------- wrapper ----------------------------------


def softsort_p2(scores, tau=1.0, *, block_b=None, block_i=None,
                out_dtype=jnp.float32):
    """SoftSort_p2.forward: scores (B, n) -> P_hat (B, n, n)."""
    scores = scores.astype(jnp.float32)
    B, n = scores.shape
    # Descending sort hoisted to XLA on the tiny (B, n) input.  Tie *order* may
    # differ from torch.sort, but only sorted values feed the kernel, so P_hat
    # is identical.
    sorted_desc = jnp.flip(jnp.sort(scores, axis=1), axis=1)

    out_bytes = jnp.dtype(out_dtype).itemsize
    target_bytes, vmem_limit = _vmem_budget()
    neg_inv_tau = -1.0 / float(tau)
    cost = pl.CostEstimate(
        flops=5 * B * n * n,
        transcendentals=B * n * n,
        bytes_accessed=B * n * n * out_bytes + 8 * B * n,
    )

    if 4 <= n <= _LANE_DENSE_MAX_N:
        # Lane-dense small-n path: (B, n*n) output (row-major identical to
        # (B, n, n), so the final reshape is free).  Smaller block target since
        # the in-kernel temporaries are output-block sized too.
        lane_target = min(4 * 1024 * 1024, target_bytes)
        row_bytes = n * n * out_bytes
        bb = block_b if block_b is not None else max(1, lane_target // row_bytes)
        bb = _pick_block_b(bb, B)

        i_idx = jnp.arange(n, dtype=jnp.int32)
        k_idx = jnp.arange(n * n, dtype=jnp.int32)
        expand = (k_idx[None, :] // n == i_idx[:, None]).astype(jnp.float32)
        tile_m = (k_idx[None, :] % n == i_idx[:, None]).astype(jnp.float32)
        gather = expand.T

        flat = pl.pallas_call(
            functools.partial(_softsort_lane_dense_kernel,
                              neg_inv_tau=neg_inv_tau),
            out_shape=jax.ShapeDtypeStruct((B, n * n), out_dtype),
            grid=(pl.cdiv(B, bb),),
            in_specs=[
                pl.BlockSpec((bb, n), lambda b: (b, 0)),
                pl.BlockSpec((bb, n), lambda b: (b, 0)),
                pl.BlockSpec((n, n * n), lambda b: (0, 0)),   # resident constants
                pl.BlockSpec((n, n * n), lambda b: (0, 0)),
                pl.BlockSpec((n * n, n), lambda b: (0, 0)),
            ],
            out_specs=pl.BlockSpec((bb, n * n), lambda b: (b, 0)),
            compiler_params=pltpu.CompilerParams(
                dimension_semantics=("parallel",),
                vmem_limit_bytes=vmem_limit,
            ),
            cost_estimate=cost,
        )(scores, sorted_desc, expand, tile_m, gather)
        return flat.reshape(B, n, n)

    # Generic path: (B, n, n) output tiled over (batch, sorted rank).
    row_bytes = n * n * out_bytes
    if block_b is None:
        block_b = target_bytes // row_bytes if row_bytes <= target_bytes else 1
    block_b = _pick_block_b(block_b, B)
    if block_i is None:
        block_i = max(1, target_bytes // (block_b * n * out_bytes))
    block_i = _pick_block_i(block_i, n)
    # NOTE: padded tail blocks (B % block_b or n % block_i != 0) feed garbage
    # rows through exp(); those rows are masked on writeback and never observed,
    # but NaN-checking debug tooling may notice them.
    # TODO(synk): for extreme n (>~4K) with B > 8 the smallest legal block can
    # still exceed the v7x VMEM budget; would need a squeezed 3-D input layout.
    grid = (pl.cdiv(B, block_b), pl.cdiv(n, block_i))
    return pl.pallas_call(
        functools.partial(_softsort_kernel, neg_inv_tau=neg_inv_tau),
        out_shape=jax.ShapeDtypeStruct((B, n, n), out_dtype),
        grid=grid,
        in_specs=[
            pl.BlockSpec((block_b, n), lambda b, i: (b, 0)),        # resident over i
            pl.BlockSpec((block_b, block_i), lambda b, i: (b, i)),
        ],
        out_specs=pl.BlockSpec((block_b, block_i, n), lambda b, i: (b, i, 0)),
        # TODO(synk): try pipeline_mode=pl.Buffered(3) on out_specs for v7x
        # (near the EUP/DMA crossover there); 2 buffers suffice on v5e/v6e.
        compiler_params=pltpu.CompilerParams(
            dimension_semantics=("parallel", "parallel"),
            vmem_limit_bytes=vmem_limit,
        ),
        cost_estimate=cost,
    )(scores, sorted_desc)


def _reference(scores, tau=1.0):
    scores = scores.astype(jnp.float32)
    sorted_desc = jnp.flip(jnp.sort(scores, axis=1), axis=1)
    logits = -((scores[:, None, :] - sorted_desc[:, :, None]) ** 2) / tau
    return jax.nn.softmax(logits, axis=-1)


if __name__ == "__main__":
    key = jax.random.PRNGKey(0)
    k1, k2, k3 = jax.random.split(key, 3)

    # 1) Module-typical small shape -> lane-dense (B, n*n) MXU path.
    s1 = jax.random.normal(k1, (2, 8), dtype=jnp.float32)
    p1 = softsort_p2(s1, tau=1.0)
    jax.block_until_ready(p1)
    assert p1.shape == (2, 8, 8)
    assert jnp.allclose(p1, _reference(s1, 1.0), atol=1e-5, rtol=1e-5)
    assert jnp.allclose(jnp.sum(p1, axis=-1), 1.0, atol=1e-5)

    # 2) Lane-dense path with a batch-tiled grid (grid = (2,)).
    s2 = jax.random.normal(k2, (16, 8), dtype=jnp.float32)
    p2 = softsort_p2(s2, tau=0.7, block_b=8)
    jax.block_until_ready(p2)
    assert jnp.allclose(p2, _reference(s2, 0.7), atol=1e-5, rtol=1e-5)

    # 3) Generic 3-D path (single rank block) and 4) rank-tiled grid (1, 2).
    s3 = jax.random.normal(k3, (2, 256), dtype=jnp.float32)
    r3 = _reference(s3, 0.5)
    p3 = softsort_p2(s3, tau=0.5)
    jax.block_until_ready(p3)
    assert jnp.allclose(p3, r3, atol=1e-5, rtol=1e-5)
    p4 = softsort_p2(s3, tau=0.5, block_b=2, block_i=128)
    jax.block_until_ready(p4)
    assert jnp.allclose(p4, r3, atol=1e-5, rtol=1e-5)

    print("KERNEL_OK")
</pallas_src>

<mosaic_0001>
module attributes {stable_mosaic.version = 11 : i64} {
  func.func @_softsort_lane_dense_kernel(%arg0: i32, %arg1: memref<2x8xf32, #tpu.memory_space<vmem>>, %arg2: memref<2x8xf32, #tpu.memory_space<vmem>>, %arg3: memref<8x64xf32, #tpu.memory_space<vmem>>, %arg4: memref<8x64xf32, #tpu.memory_space<vmem>>, %arg5: memref<64x8xf32, #tpu.memory_space<vmem>>, %arg6: memref<2x64xf32, #tpu.memory_space<vmem>>) attributes {dimension_semantics = [#tpu.dimension_semantics<parallel>], iteration_bounds = array<i64: 1>, scalar_prefetch = 0 : i64, scratch_operands = 0 : i64, tpu.core_type = #tpu.core_type<tc>, window_params = [{transform_indices = @transform_0, window_bounds = array<i64: 2, 8>}, {transform_indices = @transform_1, window_bounds = array<i64: 2, 8>}, {pipeline_mode = #tpu.pipeline_mode<synchronous>, transform_indices = @transform_2, window_bounds = array<i64: 8, 64>}, {pipeline_mode = #tpu.pipeline_mode<synchronous>, transform_indices = @transform_3, window_bounds = array<i64: 8, 64>}, {pipeline_mode = #tpu.pipeline_mode<synchronous>, transform_indices = @transform_4, window_bounds = array<i64: 64, 8>}, {transform_indices = @transform_5, window_bounds = array<i64: 2, 64>}]} {
    %c0 = arith.constant 0 : index
    %c0_0 = arith.constant 0 : index
    %0 = vector.load %arg1[%c0, %c0_0] : memref<2x8xf32, #tpu.memory_space<vmem>>, vector<2x8xf32>
    %c0_1 = arith.constant 0 : index
    %c0_2 = arith.constant 0 : index
    %1 = vector.load %arg2[%c0_1, %c0_2] : memref<2x8xf32, #tpu.memory_space<vmem>>, vector<2x8xf32>
    %c0_3 = arith.constant 0 : index
    %c0_4 = arith.constant 0 : index
    %2 = vector.load %arg3[%c0_3, %c0_4] : memref<8x64xf32, #tpu.memory_space<vmem>>, vector<8x64xf32>
    %c0_5 = arith.constant 0 : index
    %c0_6 = arith.constant 0 : index
    %3 = vector.load %arg4[%c0_5, %c0_6] : memref<8x64xf32, #tpu.memory_space<vmem>>, vector<8x64xf32>
    %c0_7 = arith.constant 0 : index
    %c0_8 = arith.constant 0 : index
    %4 = vector.load %arg5[%c0_7, %c0_8] : memref<64x8xf32, #tpu.memory_space<vmem>>, vector<64x8xf32>
    %5 = arith.truncf %0 : vector<2x8xf32> to vector<2x8xbf16>
    %6 = arith.extf %5 : vector<2x8xbf16> to vector<2x8xf32>
    %7 = arith.subf %0, %6 : vector<2x8xf32>
    %8 = arith.truncf %7 : vector<2x8xf32> to vector<2x8xbf16>
    %9 = arith.extf %8 : vector<2x8xbf16> to vector<2x8xf32>
    %10 = arith.subf %7, %9 : vector<2x8xf32>
    %cst = arith.constant dense<0.000000e+00> : vector<2x64xf32>
    %11 = tpu.matmul %6, %3, %cst {dimension_numbers = #tpu.dot_dimension_numbers<[1], [0], [0], [1], [0, 0, 1, 1], [], []>} : vector<2x8xf32>, vector<8x64xf32>, vector<2x64xf32> -> vector<2x64xf32>
    %cst_9 = arith.constant dense<0.000000e+00> : vector<2x64xf32>
    %12 = tpu.matmul %9, %3, %cst_9 {dimension_numbers = #tpu.dot_dimension_numbers<[1], [0], [0], [1], [0, 0, 1, 1], [], []>} : vector<2x8xf32>, vector<8x64xf32>, vector<2x64xf32> -> vector<2x64xf32>
    %13 = arith.addf %11, %12 : vector<2x64xf32>
    %cst_10 = arith.constant dense<0.000000e+00> : vector<2x64xf32>
    %14 = tpu.matmul %10, %3, %cst_10 {dimension_numbers = #tpu.dot_dimension_numbers<[1], [0], [0], [1], [0, 0, 1, 1], [], []>} : vector<2x8xf32>, vector<8x64xf32>, vector<2x64xf32> -> vector<2x64xf32>
    %15 = arith.addf %13, %14 : vector<2x64xf32>
    %16 = arith.truncf %1 : vector<2x8xf32> to vector<2x8xbf16>
    %17 = arith.extf %16 : vector<2x8xbf16> to vector<2x8xf32>
    %18 = arith.subf %1, %17 : vector<2x8xf32>
    %19 = arith.truncf %18 : vector<2x8xf32> to vector<2x8xbf16>
    %20 = arith.extf %19 : vector<2x8xbf16> to vector<2x8xf32>
    %21 = arith.subf %18, %20 : vector<2x8xf32>
    %cst_11 = arith.constant dense<0.000000e+00> : vector<2x64xf32>
    %22 = tpu.matmul %17, %2, %cst_11 {dimension_numbers = #tpu.dot_dimension_numbers<[1], [0], [0], [1], [0, 0, 1, 1], [], []>} : vector<2x8xf32>, vector<8x64xf32>, vector<2x64xf32> -> vector<2x64xf32>
    %cst_12 = arith.constant dense<0.000000e+00> : vector<2x64xf32>
    %23 = tpu.matmul %20, %2, %cst_12 {dimension_numbers = #tpu.dot_dimension_numbers<[1], [0], [0], [1], [0, 0, 1, 1], [], []>} : vector<2x8xf32>, vector<8x64xf32>, vector<2x64xf32> -> vector<2x64xf32>
    %24 = arith.addf %22, %23 : vector<2x64xf32>
    %cst_13 = arith.constant dense<0.000000e+00> : vector<2x64xf32>
    %25 = tpu.matmul %21, %2, %cst_13 {dimension_numbers = #tpu.dot_dimension_numbers<[1], [0], [0], [1], [0, 0, 1, 1], [], []>} : vector<2x8xf32>, vector<8x64xf32>, vector<2x64xf32> -> vector<2x64xf32>
    %26 = arith.addf %24, %25 : vector<2x64xf32>
    %27 = arith.subf %15, %26 : vector<2x64xf32>
    %28 = arith.mulf %27, %27 : vector<2x64xf32>
    %cst_14 = arith.constant -1.000000e+00 : f32
    %29 = vector.broadcast %cst_14 : f32 to vector<2x64xf32>
    %30 = arith.mulf %28, %29 : vector<2x64xf32>
    %31 = math.exp %30 : vector<2x64xf32>
    %32 = arith.truncf %31 : vector<2x64xf32> to vector<2x64xbf16>
    %33 = arith.extf %32 : vector<2x64xbf16> to vector<2x64xf32>
    %34 = arith.subf %31, %33 : vector<2x64xf32>
    %35 = arith.truncf %34 : vector<2x64xf32> to vector<2x64xbf16>
    %36 = arith.extf %35 : vector<2x64xbf16> to vector<2x64xf32>
    %37 = arith.subf %34, %36 : vector<2x64xf32>
    %cst_15 = arith.constant dense<0.000000e+00> : vector<2x8xf32>
    %38 = tpu.matmul %33, %4, %cst_15 {dimension_numbers = #tpu.dot_dimension_numbers<[1], [0], [0], [1], [0, 0, 1, 1], [], []>} : vector<2x64xf32>, vector<64x8xf32>, vector<2x8xf32> -> vector<2x8xf32>
    %cst_16 = arith.constant dense<0.000000e+00> : vector<2x8xf32>
    %39 = tpu.matmul %36, %4, %cst_16 {dimension_numbers = #tpu.dot_dimension_numbers<[1], [0], [0], [1], [0, 0, 1, 1], [], []>} : vector<2x64xf32>, vector<64x8xf32>, vector<2x8xf32> -> vector<2x8xf32>
    %40 = arith.addf %38, %39 : vector<2x8xf32>
    %cst_17 = arith.constant dense<0.000000e+00> : vector<2x8xf32>
    %41 = tpu.matmul %37, %4, %cst_17 {dimension_numbers = #tpu.dot_dimension_numbers<[1], [0], [0], [1], [0, 0, 1, 1], [], []>} : vector<2x64xf32>, vector<64x8xf32>, vector<2x8xf32> -> vector<2x8xf32>
    %42 = arith.addf %40, %41 : vector<2x8xf32>
    %43 = tpu.reciprocal %42 : vector<2x8xf32> -> vector<2x8xf32>
    %44 = arith.truncf %43 : vector<2x8xf32> to vector<2x8xbf16>
    %45 = arith.extf %44 : vector<2x8xbf16> to vector<2x8xf32>
    %46 = arith.subf %43, %45 : vector<2x8xf32>
    %47 = arith.truncf %46 : vector<2x8xf32> to vector<2x8xbf16>
    %48 = arith.extf %47 : vector<2x8xbf16> to vector<2x8xf32>
    %49 = arith.subf %46, %48 : vector<2x8xf32>
    %cst_18 = arith.constant dense<0.000000e+00> : vector<2x64xf32>
    %50 = tpu.matmul %45, %2, %cst_18 {dimension_numbers = #tpu.dot_dimension_numbers<[1], [0], [0], [1], [0, 0, 1, 1], [], []>} : vector<2x8xf32>, vector<8x64xf32>, vector<2x64xf32> -> vector<2x64xf32>
    %cst_19 = arith.constant dense<0.000000e+00> : vector<2x64xf32>
    %51 = tpu.matmul %48, %2, %cst_19 {dimension_numbers = #tpu.dot_dimension_numbers<[1], [0], [0], [1], [0, 0, 1, 1], [], []>} : vector<2x8xf32>, vector<8x64xf32>, vector<2x64xf32> -> vector<2x64xf32>
    %52 = arith.addf %50, %51 : vector<2x64xf32>
    %cst_20 = arith.constant dense<0.000000e+00> : vector<2x64xf32>
    %53 = tpu.matmul %49, %2, %cst_20 {dimension_numbers = #tpu.dot_dimension_numbers<[1], [0], [0], [1], [0, 0, 1, 1], [], []>} : vector<2x8xf32>, vector<8x64xf32>, vector<2x64xf32> -> vector<2x64xf32>
    %54 = arith.addf %52, %53 : vector<2x64xf32>
    %55 = arith.mulf %31, %54 : vector<2x64xf32>
    %c0_21 = arith.constant 0 : index
    %c0_22 = arith.constant 0 : index
    %56 = vector.load %arg6[%c0_21, %c0_22] : memref<2x64xf32, #tpu.memory_space<vmem>>, vector<2x64xf32>
    tpu.vector_store %arg6[%c0_21, %c0_22], %55 {strides = array<i32>} : memref<2x64xf32, #tpu.memory_space<vmem>>, vector<2x64xf32>,
    return
  }
  func.func @transform_0(%arg0: i32) -> (i32, i32) {
    %c0_i32 = arith.constant 0 : i32
    %c0_i32_0 = arith.constant 0 : i32
    return %arg0, %c0_i32 : i32, i32
  }
  func.func @transform_1(%arg0: i32) -> (i32, i32) {
    %c0_i32 = arith.constant 0 : i32
    %c0_i32_0 = arith.constant 0 : i32
    return %arg0, %c0_i32 : i32, i32
  }
  func.func @transform_2(%arg0: i32) -> (i32, i32) {
    %c0_i32 = arith.constant 0 : i32
    %c0_i32_0 = arith.constant 0 : i32
    %c0_i32_1 = arith.constant 0 : i32
    return %c0_i32, %c0_i32_0 : i32, i32
  }
  func.func @transform_3(%arg0: i32) -> (i32, i32) {
    %c0_i32 = arith.constant 0 : i32
    %c0_i32_0 = arith.constant 0 : i32
    %c0_i32_1 = arith.constant 0 : i32
    return %c0_i32, %c0_i32_0 : i32, i32
  }
  func.func @transform_4(%arg0: i32) -> (i32, i32) {
    %c0_i32 = arith.constant 0 : i32
    %c0_i32_0 = arith.constant 0 : i32
    %c0_i32_1 = arith.constant 0 : i32
    return %c0_i32, %c0_i32_0 : i32, i32
  }
  func.func @transform_5(%arg0: i32) -> (i32, i32) {
    %c0_i32 = arith.constant 0 : i32
    %c0_i32_0 = arith.constant 0 : i32
    return %arg0, %c0_i32 : i32, i32
  }
}

</mosaic_0001>

<llo_original>
// kernel: tpu_custom_call.1
$region0: #{tpu_custom_call.1}
  #allocation0 [shape = 'u32[]', space=smem, size = 0x4, offset = 0x4, fixed_abs, tag = 'smem constant byte address 0x4 - core index']
  #allocation1 [shape = 'u32[144,128]{1,0:T(1,128)}', space=vmem, size = 0x12000, scoped, tag = 'internal scratch']
  %s0 = inlined_call_operand.vmem [shape: f32[2,8], index: 0, kind: input, shape index: {}]
  %s1 = inlined_call_operand.vmem [shape: f32[2,8], index: 1, kind: input, shape index: {}]
  %s2 = inlined_call_operand.vmem [shape: f32[8,64], index: 2, kind: input, shape index: {}]
  %s3 = inlined_call_operand.vmem [shape: f32[8,64], index: 3, kind: input, shape index: {}]
  %s4 = inlined_call_operand.vmem [shape: f32[64,8], index: 4, kind: input, shape index: {}]
  %s5 = inlined_call_operand.hbm [shape: f32[2,64], index: 5, kind: output, shape index: {}]
  %s6 = sld [smem:[#allocation0]]
  $region30: #{tpu_custom_call.1} parent=0
    _
  %s8 = ssub.s32 1, %s6
  %s9 = scalar_select 0, %s8, %s6
  $region1: #{tpu_custom_call.1} parent=0
    #allocation2 [shape = 'u8[1024]{0}', space=vmem, size = 0x400, scoped, tag = 'output window, operand 0, single buffered']
    #allocation3 [shape = 's32[1]{0}', space=sflag, size = 0x4, scoped, tag = 'scoped memory for tpu_custom_call.1']
    %10 = vsyncpa [#allocation3], 0
    // Predicated region
    $region2: #{tpu_custom_call.1} parent=1 // pred_check
      _
    $region3: #{tpu_custom_call.1} parent=1 // pred_check_branch
      %12 = sbr.rel (0) target = $region5
    $region4: #{tpu_custom_call.1} parent=1 // pred_region
      _
    $region5: #{tpu_custom_call.1} parent=1 // pred_fallthru
      _
    // Predicated region
    $region6: #{tpu_custom_call.1} parent=1 // pred_check
      _
    $region7: #{tpu_custom_call.1} parent=1 // pred_check_branch
      %14 = sbr.rel (0) target = $region9
    $region8: #{tpu_custom_call.1} parent=1 // pred_region
      _
    $region9: #{tpu_custom_call.1} parent=1 // pred_fallthru
      _
    // Predicated region
    $region10: #{tpu_custom_call.1} parent=1 // pred_check
      _
    $region11: #{tpu_custom_call.1} parent=1 // pred_check_branch
      %16 = sbr.rel (0) target = $region13
    $region12: #{tpu_custom_call.1} parent=1 // pred_region
      _
    $region13: #{tpu_custom_call.1} parent=1 // pred_fallthru
      _
    // Predicated region
    $region14: #{tpu_custom_call.1} parent=1 // pred_check
      _
    $region15: #{tpu_custom_call.1} parent=1 // pred_check_branch
      %18 = sbr.rel (0) target = $region17
    $region16: #{tpu_custom_call.1} parent=1 // pred_region
      _
    $region17: #{tpu_custom_call.1} parent=1 // pred_fallthru
      _
    // Predicated region
    $region18: #{tpu_custom_call.1} parent=1 // pred_check
      _
    $region19: #{tpu_custom_call.1} parent=1 // pred_check_branch
      %20 = sbr.rel (0) target = $region21
    $region20: #{tpu_custom_call.1} parent=1 // pred_region
      _
    $region21: #{tpu_custom_call.1} parent=1 // pred_fallthru
      _
    %v21 = vld [vmem:[%s0] sm:$0x3]
    %v22 = vld [vmem:[%s1] sm:$0x3]
    %v23 = vld [vmem:[%s2] sm:$0xff]
    %v24 = vld [vmem:[%s3] sm:$0xff]
    %v25 = vld [vmem:[%s4] sm:$0xff]
    %v26 = vld [vmem:[%s4 + $0x8] sm:$0xff]
    %v27 = vld [vmem:[%s4 + $0x10] sm:$0xff]
    %v28 = vld [vmem:[%s4 + $0x18] sm:$0xff]
    %v29 = vld [vmem:[%s4 + $0x20] sm:$0xff]
    %v30 = vld [vmem:[%s4 + $0x28] sm:$0xff]
    %v31 = vld [vmem:[%s4 + $0x30] sm:$0xff]
    %v32 = vld [vmem:[%s4 + $0x38] sm:$0xff]
    %v33 = vpack.c.bf16 %v21, %v21
    %v34 = vunpack.c.l.bf16 %v33
    %v35 = vsub.f32 %v21, %v34
    %v36 = vpack.c.bf16 %v35, %v35
    %v37 = vunpack.c.l.bf16 %v36
    %v38 = vsub.f32 %v35, %v37
    %vm39 = vcmask 64512
    %v41 = vsel %vm39, %v37, 0
    %43 = vmatprep.subr.mxu0 0.0
    %44 = vmatpush1.msra.mxu0 0.0
    %45 = vmatprep.subr.mxu0 0.0
    %46 = vmatpush1.msra.mxu0 0.0
    %47 = vmatprep.subr.mxu0 0.0
    %48 = vmatpush1.msra.mxu0 0.0
    %49 = vmatprep.subr.mxu0 0.0
    %50 = vmatpush1.msra.mxu0 0.0
    %51 = vmatprep.subr.mxu0 0.0
    %52 = vmatpush1.msra.mxu0 0.0
    %53 = vmatprep.subr.mxu0 0.0
    %54 = vmatpush1.msra.mxu0 0.0
    %55 = vmatprep.subr.mxu0 0.0
    %56 = vmatpush1.msra.mxu0 0.0
    %57 = vmatprep.subr.mxu0 0.0
    %58 = vmatpush1.msra.mxu0 0.0
    %59 = vmatprep.subr.mxu0 0.0
    %60 = vmatpush1.msra.mxu0 0.0
    %61 = vmatprep.subr.mxu0 0.0
    %62 = vmatpush1.msra.mxu0 0.0
    %63 = vmatprep.subr.mxu0 0.0
    %64 = vmatpush1.msra.mxu0 0.0
    %65 = vmatprep.subr.mxu0 0.0
    %66 = vmatpush1.msra.mxu0 0.0
    %67 = vmatprep.subr.mxu0 0.0
    %68 = vmatpush1.msra.mxu0 0.0
    %69 = vmatprep.subr.mxu0 0.0
    %70 = vmatpush1.msra.mxu0 0.0
    %71 = vmatprep.subr.mxu0 0.0
    %72 = vmatpush1.msra.mxu0 0.0
    %73 = vmatprep.subr.mxu0 0.0
    %74 = vmatpush1.msra.mxu0 %v24
    %75 = vmatprep.subr.mxu0 0.0
    %76 = vmatpush2.msra.mxu0 0.0
    %77 = vmatprep.subr.mxu0 0.0
    %78 = vmatpush2.msra.mxu0 0.0
    %79 = vmatprep.subr.mxu0 0.0
    %80 = vmatpush2.msra.mxu0 0.0
    %81 = vmatprep.subr.mxu0 0.0
    %82 = vmatpush2.msra.mxu0 0.0
    %83 = vmatprep.subr.mxu0 0.0
    %84 = vmatpush2.msra.mxu0 0.0
    %85 = vmatprep.subr.mxu0 0.0
    %86 = vmatpush2.msra.mxu0 0.0
    %87 = vmatprep.subr.mxu0 0.0
    %88 = vmatpush2.msra.mxu0 0.0
    %89 = vmatprep.subr.mxu0 0.0
    %90 = vmatpush2.msra.mxu0 0.0
    %91 = vmatprep.subr.mxu0 0.0
    %92 = vmatpush2.msra.mxu0 0.0
    %93 = vmatprep.subr.mxu0 0.0
    %94 = vmatpush2.msra.mxu0 0.0
    %95 = vmatprep.subr.mxu0 0.0
    %96 = vmatpush2.msra.mxu0 0.0
    %97 = vmatprep.subr.mxu0 0.0
    %98 = vmatpush2.msra.mxu0 0.0
    %99 = vmatprep.subr.mxu0 0.0
    %100 = vmatpush2.msra.mxu0 0.0
    %101 = vmatprep.subr.mxu0 0.0
    %102 = vmatpush2.msra.mxu0 0.0
    %103 = vmatprep.subr.mxu0 0.0
    %104 = vmatpush2.msra.mxu0 0.0
    %105 = vmatprep.subr.mxu0 0.0
    %106 = vmatpush2.msra.mxu0 0.0
    %107 = vmatprep.mubr.f32.mxu0 0.0
    %108 = vmatmul.mubr.f32.gmra.mxu0 %v41
    %v109 = vpop.f32.mrf.mxu0
    %v110 = vadd.f32 0.0, %v109
    %v111 = vpop.f32.mrf.mxu0
    %112 = vdwg.mxu0
    %v114 = vsel %vm39, %v34, 0
    %116 = vmatprep.subr.mxu0 0.0
    %117 = vmatpush1.msra.mxu0 0.0
    %118 = vmatprep.subr.mxu0 0.0
    %119 = vmatpush1.msra.mxu0 0.0
    %120 = vmatprep.subr.mxu0 0.0
    %121 = vmatpush1.msra.mxu0 0.0
    %122 = vmatprep.subr.mxu0 0.0
    %123 = vmatpush1.msra.mxu0 0.0
    %124 = vmatprep.subr.mxu0 0.0
    %125 = vmatpush1.msra.mxu0 0.0
    %126 = vmatprep.subr.mxu0 0.0
    %127 = vmatpush1.msra.mxu0 0.0
    %128 = vmatprep.subr.mxu0 0.0
    %129 = vmatpush1.msra.mxu0 0.0
    %130 = vmatprep.subr.mxu0 0.0
    %131 = vmatpush1.msra.mxu0 0.0
    %132 = vmatprep.subr.mxu0 0.0
    %133 = vmatpush1.msra.mxu0 0.0
    %134 = vmatprep.subr.mxu0 0.0
    %135 = vmatpush1.msra.mxu0 0.0
    %136 = vmatprep.subr.mxu0 0.0
    %137 = vmatpush1.msra.mxu0 0.0
    %138 = vmatprep.subr.mxu0 0.0
    %139 = vmatpush1.msra.mxu0 0.0
    %140 = vmatprep.subr.mxu0 0.0
    %141 = vmatpush1.msra.mxu0 0.0
    %142 = vmatprep.subr.mxu0 0.0
    %143 = vmatpush1.msra.mxu0 0.0
    %144 = vmatprep.subr.mxu0 0.0
    %145 = vmatpush1.msra.mxu0 0.0
    %146 = vmatprep.subr.mxu0 0.0
    %147 = vmatpush1.msra.mxu0 %v24
    %148 = vmatprep.subr.mxu0 0.0
    %149 = vmatpush2.msra.mxu0 0.0
    %150 = vmatprep.subr.mxu0 0.0
    %151 = vmatpush2.msra.mxu0 0.0
    %152 = vmatprep.subr.mxu0 0.0
    %153 = vmatpush2.msra.mxu0 0.0
    %154 = vmatprep.subr.mxu0 0.0
    %155 = vmatpush2.msra.mxu0 0.0
    %156 = vmatprep.subr.mxu0 0.0
    %157 = vmatpush2.msra.mxu0 0.0
    %158 = vmatprep.subr.mxu0 0.0
    %159 = vmatpush2.msra.mxu0 0.0
    %160 = vmatprep.subr.mxu0 0.0
    %161 = vmatpush2.msra.mxu0 0.0
    %162 = vmatprep.subr.mxu0 0.0
    %163 = vmatpush2.msra.mxu0 0.0
    %164 = vmatprep.subr.mxu0 0.0
    %165 = vmatpush2.msra.mxu0 0.0
    %166 = vmatprep.subr.mxu0 0.0
    %167 = vmatpush2.msra.mxu0 0.0
    %168 = vmatprep.subr.mxu0 0.0
    %169 = vmatpush2.msra.mxu0 0.0
    %170 = vmatprep.subr.mxu0 0.0
    %171 = vmatpush2.msra.mxu0 0.0
    %172 = vmatprep.subr.mxu0 0.0
    %173 = vmatpush2.msra.mxu0 0.0
    %174 = vmatprep.subr.mxu0 0.0
    %175 = vmatpush2.msra.mxu0 0.0
    %176 = vmatprep.subr.mxu0 0.0
    %177 = vmatpush2.msra.mxu0 0.0
    %178 = vmatprep.subr.mxu0 0.0
    %179 = vmatpush2.msra.mxu0 0.0
    %180 = vmatprep.mubr.f32.mxu0 0.0
    %181 = vmatmul.mubr.f32.gmra.mxu0 %v114
    %v182 = vpop.f32.mrf.mxu0
    %v183 = vadd.f32 %v110, %v182
    %v184 = vpop.f32.mrf.mxu0
    %185 = vdwg.mxu0
    %v187 = vsel %vm39, %v38, 0
    %189 = vmatprep.subr.mxu0 0.0
    %190 = vmatpush1.msra.mxu0 0.0
    %191 = vmatprep.subr.mxu0 0.0
    %192 = vmatpush1.msra.mxu0 0.0
    %193 = vmatprep.subr.mxu0 0.0
    %194 = vmatpush1.msra.mxu0 0.0
    %195 = vmatprep.subr.mxu0 0.0
    %196 = vmatpush1.msra.mxu0 0.0
    %197 = vmatprep.subr.mxu0 0.0
    %198 = vmatpush1.msra.mxu0 0.0
    %199 = vmatprep.subr.mxu0 0.0
    %200 = vmatpush1.msra.mxu0 0.0
    %201 = vmatprep.subr.mxu0 0.0
    %202 = vmatpush1.msra.mxu0 0.0
    %203 = vmatprep.subr.mxu0 0.0
    %204 = vmatpush1.msra.mxu0 0.0
    %205 = vmatprep.subr.mxu0 0.0
    %206 = vmatpush1.msra.mxu0 0.0
    %207 = vmatprep.subr.mxu0 0.0
    %208 = vmatpush1.msra.mxu0 0.0
    %209 = vmatprep.subr.mxu0 0.0
    %210 = vmatpush1.msra.mxu0 0.0
    %211 = vmatprep.subr.mxu0 0.0
    %212 = vmatpush1.msra.mxu0 0.0
    %213 = vmatprep.subr.mxu0 0.0
    %214 = vmatpush1.msra.mxu0 0.0
    %215 = vmatprep.subr.mxu0 0.0
    %216 = vmatpush1.msra.mxu0 0.0
    %217 = vmatprep.subr.mxu0 0.0
    %218 = vmatpush1.msra.mxu0 0.0
    %219 = vmatprep.subr.mxu0 0.0
    %220 = vmatpush1.msra.mxu0 %v24
    %221 = vmatprep.subr.mxu0 0.0
    %222 = vmatpush2.msra.mxu0 0.0
    %223 = vmatprep.subr.mxu0 0.0
    %224 = vmatpush2.msra.mxu0 0.0
    %225 = vmatprep.subr.mxu0 0.0
    %226 = vmatpush2.msra.mxu0 0.0
    %227 = vmatprep.subr.mxu0 0.0
    %228 = vmatpush2.msra.mxu0 0.0
    %229 = vmatprep.subr.mxu0 0.0
    %230 = vmatpush2.msra.mxu0 0.0
    %231 = vmatprep.subr.mxu0 0.0
    %232 = vmatpush2.msra.mxu0 0.0
    %233 = vmatprep.subr.mxu0 0.0
    %234 = vmatpush2.msra.mxu0 0.0
    %235 = vmatprep.subr.mxu0 0.0
    %236 = vmatpush2.msra.mxu0 0.0
    %237 = vmatprep.subr.mxu0 0.0
    %238 = vmatpush2.msra.mxu0 0.0
    %239 = vmatprep.subr.mxu0 0.0
    %240 = vmatpush2.msra.mxu0 0.0
    %241 = vmatprep.subr.mxu0 0.0
    %242 = vmatpush2.msra.mxu0 0.0
    %243 = vmatprep.subr.mxu0 0.0
    %244 = vmatpush2.msra.mxu0 0.0
    %245 = vmatprep.subr.mxu0 0.0
    %246 = vmatpush2.msra.mxu0 0.0
    %247 = vmatprep.subr.mxu0 0.0
    %248 = vmatpush2.msra.mxu0 0.0
    %249 = vmatprep.subr.mxu0 0.0
    %250 = vmatpush2.msra.mxu0 0.0
    %251 = vmatprep.subr.mxu0 0.0
    %252 = vmatpush2.msra.mxu0 0.0
    %253 = vmatprep.mubr.f32.mxu0 0.0
    %254 = vmatmul.mubr.f32.gmra.mxu0 %v187
    %v255 = vpop.f32.mrf.mxu0
    %v256 = vadd.f32 0.0, %v255
    %v257 = vpop.f32.mrf.mxu0
    %258 = vdwg.mxu0
    %v259 = vadd.f32 %v183, %v256
    %v260 = vpack.c.bf16 %v22, %v22
    %v261 = vunpack.c.l.bf16 %v260
    %v262 = vsub.f32 %v22, %v261
    %v263 = vpack.c.bf16 %v262, %v262
    %v264 = vunpack.c.l.bf16 %v263
    %v265 = vsub.f32 %v262, %v264
    %v267 = vsel %vm39, %v264, 0
    %269 = vmatprep.subr.mxu0 0.0
    %270 = vmatpush1.msra.mxu0 0.0
    %271 = vmatprep.subr.mxu0 0.0
    %272 = vmatpush1.msra.mxu0 0.0
    %273 = vmatprep.subr.mxu0 0.0
    %274 = vmatpush1.msra.mxu0 0.0
    %275 = vmatprep.subr.mxu0 0.0
    %276 = vmatpush1.msra.mxu0 0.0
    %277 = vmatprep.subr.mxu0 0.0
    %278 = vmatpush1.msra.mxu0 0.0
    %279 = vmatprep.subr.mxu0 0.0
    %280 = vmatpush1.msra.mxu0 0.0
    %281 = vmatprep.subr.mxu0 0.0
    %282 = vmatpush1.msra.mxu0 0.0
    %283 = vmatprep.subr.mxu0 0.0
    %284 = vmatpush1.msra.mxu0 0.0
    %285 = vmatprep.subr.mxu0 0.0
    %286 = vmatpush1.msra.mxu0 0.0
    %287 = vmatprep.subr.mxu0 0.0
    %288 = vmatpush1.msra.mxu0 0.0
    %289 = vmatprep.subr.mxu0 0.0
    %290 = vmatpush1.msra.mxu0 0.0
    %291 = vmatprep.subr.mxu0 0.0
    %292 = vmatpush1.msra.mxu0 0.0
    %293 = vmatprep.subr.mxu0 0.0
    %294 = vmatpush1.msra.mxu0 0.0
    %295 = vmatprep.subr.mxu0 0.0
    %296 = vmatpush1.msra.mxu0 0.0
    %297 = vmatprep.subr.mxu0 0.0
    %298 = vmatpush1.msra.mxu0 0.0
    %299 = vmatprep.subr.mxu0 0.0
    %300 = vmatpush1.msra.mxu0 %v23
    %301 = vmatprep.subr.mxu0 0.0
    %302 = vmatpush2.msra.mxu0 0.0
    %303 = vmatprep.subr.mxu0 0.0
    %304 = vmatpush2.msra.mxu0 0.0
    %305 = vmatprep.subr.mxu0 0.0
    %306 = vmatpush2.msra.mxu0 0.0
    %307 = vmatprep.subr.mxu0 0.0
    %308 = vmatpush2.msra.mxu0 0.0
    %309 = vmatprep.subr.mxu0 0.0
    %310 = vmatpush2.msra.mxu0 0.0
    %311 = vmatprep.subr.mxu0 0.0
    %312 = vmatpush2.msra.mxu0 0.0
    %313 = vmatprep.subr.mxu0 0.0
    %314 = vmatpush2.msra.mxu0 0.0
    %315 = vmatprep.subr.mxu0 0.0
    %316 = vmatpush2.msra.mxu0 0.0
    %317 = vmatprep.subr.mxu0 0.0
    %318 = vmatpush2.msra.mxu0 0.0
    %319 = vmatprep.subr.mxu0 0.0
    %320 = vmatpush2.msra.mxu0 0.0
    %321 = vmatprep.subr.mxu0 0.0
    %322 = vmatpush2.msra.mxu0 0.0
    %323 = vmatprep.subr.mxu0 0.0
    %324 = vmatpush2.msra.mxu0 0.0
    %325 = vmatprep.subr.mxu0 0.0
    %326 = vmatpush2.msra.mxu0 0.0
    %327 = vmatprep.subr.mxu0 0.0
    %328 = vmatpush2.msra.mxu0 0.0
    %329 = vmatprep.subr.mxu0 0.0
    %330 = vmatpush2.msra.mxu0 0.0
    %331 = vmatprep.subr.mxu0 0.0
    %332 = vmatpush2.msra.mxu0 0.0
    %333 = vmatprep.mubr.f32.mxu0 0.0
    %334 = vmatmul.mubr.f32.gmra.mxu0 %v267
    %v335 = vpop.f32.mrf.mxu0
    %v336 = vadd.f32 0.0, %v335
    %v337 = vpop.f32.mrf.mxu0
    %338 = vdwg.mxu0
    %v340 = vsel %vm39, %v261, 0
    %342 = vmatprep.subr.mxu0 0.0
    %343 = vmatpush1.msra.mxu0 0.0
    %344 = vmatprep.subr.mxu0 0.0
    %345 = vmatpush1.msra.mxu0 0.0
    %346 = vmatprep.subr.mxu0 0.0
    %347 = vmatpush1.msra.mxu0 0.0
    %348 = vmatprep.subr.mxu0 0.0
    %349 = vmatpush1.msra.mxu0 0.0
    %350 = vmatprep.subr.mxu0 0.0
    %351 = vmatpush1.msra.mxu0 0.0
    %352 = vmatprep.subr.mxu0 0.0
    %353 = vmatpush1.msra.mxu0 0.0
    %354 = vmatprep.subr.mxu0 0.0
    %355 = vmatpush1.msra.mxu0 0.0
    %356 = vmatprep.subr.mxu0 0.0
    %357 = vmatpush1.msra.mxu0 0.0
    %358 = vmatprep.subr.mxu0 0.0
    %359 = vmatpush1.msra.mxu0 0.0
    %360 = vmatprep.subr.mxu0 0.0
    %361 = vmatpush1.msra.mxu0 0.0
    %362 = vmatprep.subr.mxu0 0.0
    %363 = vmatpush1.msra.mxu0 0.0
    %364 = vmatprep.subr.mxu0 0.0
    %365 = vmatpush1.msra.mxu0 0.0
    %366 = vmatprep.subr.mxu0 0.0
    %367 = vmatpush1.msra.mxu0 0.0
    %368 = vmatprep.subr.mxu0 0.0
    %369 = vmatpush1.msra.mxu0 0.0
    %370 = vmatprep.subr.mxu0 0.0
    %371 = vmatpush1.msra.mxu0 0.0
    %372 = vmatprep.subr.mxu0 0.0
    %373 = vmatpush1.msra.mxu0 %v23
    %374 = vmatprep.subr.mxu0 0.0
    %375 = vmatpush2.msra.mxu0 0.0
    %376 = vmatprep.subr.mxu0 0.0
    %377 = vmatpush2.msra.mxu0 0.0
    %378 = vmatprep.subr.mxu0 0.0
    %379 = vmatpush2.msra.mxu0 0.0
    %380 = vmatprep.subr.mxu0 0.0
    %381 = vmatpush2.msra.mxu0 0.0
    %382 = vmatprep.subr.mxu0 0.0
    %383 = vmatpush2.msra.mxu0 0.0
    %384 = vmatprep.subr.mxu0 0.0
    %385 = vmatpush2.msra.mxu0 0.0
    %386 = vmatprep.subr.mxu0 0.0
    %387 = vmatpush2.msra.mxu0 0.0
    %388 = vmatprep.subr.mxu0 0.0
    %389 = vmatpush2.msra.mxu0 0.0
    %390 = vmatprep.subr.mxu0 0.0
    %391 = vmatpush2.msra.mxu0 0.0
    %392 = vmatprep.subr.mxu0 0.0
    %393 = vmatpush2.msra.mxu0 0.0
    %394 = vmatprep.subr.mxu0 0.0
    %395 = vmatpush2.msra.mxu0 0.0
    %396 = vmatprep.subr.mxu0 0.0
    %397 = vmatpush2.msra.mxu0 0.0
    %398 = vmatprep.subr.mxu0 0.0
    %399 = vmatpush2.msra.mxu0 0.0
    %400 = vmatprep.subr.mxu0 0.0
    %401 = vmatpush2.msra.mxu0 0.0
    %402 = vmatprep.subr.mxu0 0.0
    %403 = vmatpush2.msra.mxu0 0.0
    %404 = vmatprep.subr.mxu0 0.0
    %405 = vmatpush2.msra.mxu0 0.0
    %406 = vmatprep.mubr.f32.mxu0 0.0
    %407 = vmatmul.mubr.f32.gmra.mxu0 %v340
    %v408 = vpop.f32.mrf.mxu0
    %v409 = vadd.f32 %v336, %v408
    %v410 = vpop.f32.mrf.mxu0
    %411 = vdwg.mxu0
    %v413 = vsel %vm39, %v265, 0
    %415 = vmatprep.subr.mxu0 0.0
    %416 = vmatpush1.msra.mxu0 0.0
    %417 = vmatprep.subr.mxu0 0.0
    %418 = vmatpush1.msra.mxu0 0.0
    %419 = vmatprep.subr.mxu0 0.0
    %420 = vmatpush1.msra.mxu0 0.0
    %421 = vmatprep.subr.mxu0 0.0
    %422 = vmatpush1.msra.mxu0 0.0
    %423 = vmatprep.subr.mxu0 0.0
    %424 = vmatpush1.msra.mxu0 0.0
    %425 = vmatprep.subr.mxu0 0.0
    %426 = vmatpush1.msra.mxu0 0.0
    %427 = vmatprep.subr.mxu0 0.0
    %428 = vmatpush1.msra.mxu0 0.0
    %429 = vmatprep.subr.mxu0 0.0
    %430 = vmatpush1.msra.mxu0 0.0
    %431 = vmatprep.subr.mxu0 0.0
    %432 = vmatpush1.msra.mxu0 0.0
    %433 = vmatprep.subr.mxu0 0.0
    %434 = vmatpush1.msra.mxu0 0.0
    %435 = vmatprep.subr.mxu0 0.0
    %436 = vmatpush1.msra.mxu0 0.0
    %437 = vmatprep.subr.mxu0 0.0
    %438 = vmatpush1.msra.mxu0 0.0
    %439 = vmatprep.subr.mxu0 0.0
    %440 = vmatpush1.msra.mxu0 0.0
    %441 = vmatprep.subr.mxu0 0.0
    %442 = vmatpush1.msra.mxu0 0.0
    %443 = vmatprep.subr.mxu0 0.0
    %444 = vmatpush1.msra.mxu0 0.0
    %445 = vmatprep.subr.mxu0 0.0
    %446 = vmatpush1.msra.mxu0 %v23
    %447 = vmatprep.subr.mxu0 0.0
    %448 = vmatpush2.msra.mxu0 0.0
    %449 = vmatprep.subr.mxu0 0.0
    %450 = vmatpush2.msra.mxu0 0.0
    %451 = vmatprep.subr.mxu0 0.0
    %452 = vmatpush2.msra.mxu0 0.0
    %453 = vmatprep.subr.mxu0 0.0
    %454 = vmatpush2.msra.mxu0 0.0
    %455 = vmatprep.subr.mxu0 0.0
    %456 = vmatpush2.msra.mxu0 0.0
    %457 = vmatprep.subr.mxu0 0.0
    %458 = vmatpush2.msra.mxu0 0.0
    %459 = vmatprep.subr.mxu0 0.0
    %460 = vmatpush2.msra.mxu0 0.0
    %461 = vmatprep.subr.mxu0 0.0
    %462 = vmatpush2.msra.mxu0 0.0
    %463 = vmatprep.subr.mxu0 0.0
    %464 = vmatpush2.msra.mxu0 0.0
    %465 = vmatprep.subr.mxu0 0.0
    %466 = vmatpush2.msra.mxu0 0.0
    %467 = vmatprep.subr.mxu0 0.0
    %468 = vmatpush2.msra.mxu0 0.0
    %469 = vmatprep.subr.mxu0 0.0
    %470 = vmatpush2.msra.mxu0 0.0
    %471 = vmatprep.subr.mxu0 0.0
    %472 = vmatpush2.msra.mxu0 0.0
    %473 = vmatprep.subr.mxu0 0.0
    %474 = vmatpush2.msra.mxu0 0.0
    %475 = vmatprep.subr.mxu0 0.0
    %476 = vmatpush2.msra.mxu0 0.0
    %477 = vmatprep.subr.mxu0 0.0
    %478 = vmatpush2.msra.mxu0 0.0
    %479 = vmatprep.mubr.f32.mxu0 0.0
    %480 = vmatmul.mubr.f32.gmra.mxu0 %v413
    %v481 = vpop.f32.mrf.mxu0
    %v482 = vadd.f32 0.0, %v481
    %v483 = vpop.f32.mrf.mxu0
    %484 = vdwg.mxu0
    %v485 = vadd.f32 %v409, %v482
    %v486 = vsub.f32 %v259, %v485
    %v487 = vmul.f32 %v486, %v486
    %v488 = vmul.f32 %v487, -1.0
    %v489 = vmul.f32 %v488, 1.442695
    %v490 = vpow.pop %v489
    %v491 = vpack.c.bf16 %v490, %v490
    %v492 = vunpack.c.l.bf16 %v491
    %v493 = vsub.f32 %v490, %v492
    %v494 = vpack.c.bf16 %v493, %v493
    %v495 = vunpack.c.l.bf16 %v494
    %v496 = vsub.f32 %v493, %v495
    %vm497 = vcmask 523264
    %v499 = vsel %vm497, %v495, 0
    %501 = vmatprep.subr.mxu0 0.0
    %502 = vmatpush1.msra.mxu0 0.0
    %503 = vmatprep.subr.mxu0 0.0
    %504 = vmatpush1.msra.mxu0 0.0
    %505 = vmatprep.subr.mxu0 0.0
    %506 = vmatpush1.msra.mxu0 0.0
    %507 = vmatprep.subr.mxu0 0.0
    %508 = vmatpush1.msra.mxu0 0.0
    %509 = vmatprep.subr.mxu0 0.0
    %510 = vmatpush1.msra.mxu0 0.0
    %511 = vmatprep.subr.mxu0 0.0
    %512 = vmatpush1.msra.mxu0 0.0
    %513 = vmatprep.subr.mxu0 0.0
    %514 = vmatpush1.msra.mxu0 0.0
    %515 = vmatprep.subr.mxu0 0.0
    %516 = vmatpush1.msra.mxu0 0.0
    %517 = vmatprep.subr.mxu0 0.0
    %518 = vmatpush1.msra.mxu0 %v32
    %519 = vmatprep.subr.mxu0 0.0
    %520 = vmatpush1.msra.mxu0 %v31
    %521 = vmatprep.subr.mxu0 0.0
    %522 = vmatpush1.msra.mxu0 %v30
    %523 = vmatprep.subr.mxu0 0.0
    %524 = vmatpush1.msra.mxu0 %v29
    %525 = vmatprep.subr.mxu0 0.0
    %526 = vmatpush1.msra.mxu0 %v28
    %527 = vmatprep.subr.mxu0 0.0
    %528 = vmatpush1.msra.mxu0 %v27
    %529 = vmatprep.subr.mxu0 0.0
    %530 = vmatpush1.msra.mxu0 %v26
    %531 = vmatprep.subr.mxu0 0.0
    %532 = vmatpush1.msra.mxu0 %v25
    %533 = vmatprep.subr.mxu0 0.0
    %534 = vmatpush2.msra.mxu0 0.0
    %535 = vmatprep.subr.mxu0 0.0
    %536 = vmatpush2.msra.mxu0 0.0
    %537 = vmatprep.subr.mxu0 0.0
    %538 = vmatpush2.msra.mxu0 0.0
    %539 = vmatprep.subr.mxu0 0.0
    %540 = vmatpush2.msra.mxu0 0.0
    %541 = vmatprep.subr.mxu0 0.0
    %542 = vmatpush2.msra.mxu0 0.0
    %543 = vmatprep.subr.mxu0 0.0
    %544 = vmatpush2.msra.mxu0 0.0
    %545 = vmatprep.subr.mxu0 0.0
    %546 = vmatpush2.msra.mxu0 0.0
    %547 = vmatprep.subr.mxu0 0.0
    %548 = vmatpush2.msra.mxu0 0.0
    %549 = vmatprep.subr.mxu0 0.0
    %550 = vmatpush2.msra.mxu0 0.0
    %551 = vmatprep.subr.mxu0 0.0
    %552 = vmatpush2.msra.mxu0 0.0
    %553 = vmatprep.subr.mxu0 0.0
    %554 = vmatpush2.msra.mxu0 0.0
    %555 = vmatprep.subr.mxu0 0.0
    %556 = vmatpush2.msra.mxu0 0.0
    %557 = vmatprep.subr.mxu0 0.0
    %558 = vmatpush2.msra.mxu0 0.0
    %559 = vmatprep.subr.mxu0 0.0
    %560 = vmatpush2.msra.mxu0 0.0
    %561 = vmatprep.subr.mxu0 0.0
    %562 = vmatpush2.msra.mxu0 0.0
    %563 = vmatprep.subr.mxu0 0.0
    %564 = vmatpush2.msra.mxu0 0.0
    %565 = vmatprep.mubr.f32.mxu0 0.0
    %566 = vmatmul.mubr.f32.gmra.mxu0 %v499
    %v567 = vpop.f32.mrf.mxu0
    %v568 = vadd.f32 0.0, %v567
    %v569 = vpop.f32.mrf.mxu0
    %570 = vdwg.mxu0
    %v572 = vsel %vm497, %v492, 0
    %574 = vmatprep.subr.mxu0 0.0
    %575 = vmatpush1.msra.mxu0 0.0
    %576 = vmatprep.subr.mxu0 0.0
    %577 = vmatpush1.msra.mxu0 0.0
    %578 = vmatprep.subr.mxu0 0.0
    %579 = vmatpush1.msra.mxu0 0.0
    %580 = vmatprep.subr.mxu0 0.0
    %581 = vmatpush1.msra.mxu0 0.0
    %582 = vmatprep.subr.mxu0 0.0
    %583 = vmatpush1.msra.mxu0 0.0
    %584 = vmatprep.subr.mxu0 0.0
    %585 = vmatpush1.msra.mxu0 0.0
    %586 = vmatprep.subr.mxu0 0.0
    %587 = vmatpush1.msra.mxu0 0.0
    %588 = vmatprep.subr.mxu0 0.0
    %589 = vmatpush1.msra.mxu0 0.0
    %590 = vmatprep.subr.mxu0 0.0
    %591 = vmatpush1.msra.mxu0 %v32
    %592 = vmatprep.subr.mxu0 0.0
    %593 = vmatpush1.msra.mxu0 %v31
    %594 = vmatprep.subr.mxu0 0.0
    %595 = vmatpush1.msra.mxu0 %v30
    %596 = vmatprep.subr.mxu0 0.0
    %597 = vmatpush1.msra.mxu0 %v29
    %598 = vmatprep.subr.mxu0 0.0
    %599 = vmatpush1.msra.mxu0 %v28
    %600 = vmatprep.subr.mxu0 0.0
    %601 = vmatpush1.msra.mxu0 %v27
    %602 = vmatprep.subr.mxu0 0.0
    %603 = vmatpush1.msra.mxu0 %v26
    %604 = vmatprep.subr.mxu0 0.0
    %605 = vmatpush1.msra.mxu0 %v25
    %606 = vmatprep.subr.mxu0 0.0
    %607 = vmatpush2.msra.mxu0 0.0
    %608 = vmatprep.subr.mxu0 0.0
    %609 = vmatpush2.msra.mxu0 0.0
    %610 = vmatprep.subr.mxu0 0.0
    %611 = vmatpush2.msra.mxu0 0.0
    %612 = vmatprep.subr.mxu0 0.0
    %613 = vmatpush2.msra.mxu0 0.0
    %614 = vmatprep.subr.mxu0 0.0
    %615 = vmatpush2.msra.mxu0 0.0
    %616 = vmatprep.subr.mxu0 0.0
    %617 = vmatpush2.msra.mxu0 0.0
    %618 = vmatprep.subr.mxu0 0.0
    %619 = vmatpush2.msra.mxu0 0.0
    %620 = vmatprep.subr.mxu0 0.0
    %621 = vmatpush2.msra.mxu0 0.0
    %622 = vmatprep.subr.mxu0 0.0
    %623 = vmatpush2.msra.mxu0 0.0
    %624 = vmatprep.subr.mxu0 0.0
    %625 = vmatpush2.msra.mxu0 0.0
    %626 = vmatprep.subr.mxu0 0.0
    %627 = vmatpush2.msra.mxu0 0.0
    %628 = vmatprep.subr.mxu0 0.0
    %629 = vmatpush2.msra.mxu0 0.0
    %630 = vmatprep.subr.mxu0 0.0
    %631 = vmatpush2.msra.mxu0 0.0
    %632 = vmatprep.subr.mxu0 0.0
    %633 = vmatpush2.msra.mxu0 0.0
    %634 = vmatprep.subr.mxu0 0.0
    %635 = vmatpush2.msra.mxu0 0.0
    %636 = vmatprep.subr.mxu0 0.0
    %637 = vmatpush2.msra.mxu0 0.0
    %638 = vmatprep.mubr.f32.mxu0 0.0
    %639 = vmatmul.mubr.f32.gmra.mxu0 %v572
    %v640 = vpop.f32.mrf.mxu0
    %v641 = vadd.f32 %v568, %v640
    %v642 = vpop.f32.mrf.mxu0
    %643 = vdwg.mxu0
    %v645 = vsel %vm497, %v496, 0
    %647 = vmatprep.subr.mxu0 0.0
    %648 = vmatpush1.msra.mxu0 0.0
    %649 = vmatprep.subr.mxu0 0.0
    %650 = vmatpush1.msra.mxu0 0.0
    %651 = vmatprep.subr.mxu0 0.0
    %652 = vmatpush1.msra.mxu0 0.0
    %653 = vmatprep.subr.mxu0 0.0
    %654 = vmatpush1.msra.mxu0 0.0
    %655 = vmatprep.subr.mxu0 0.0
    %656 = vmatpush1.msra.mxu0 0.0
    %657 = vmatprep.subr.mxu0 0.0
    %658 = vmatpush1.msra.mxu0 0.0
    %659 = vmatprep.subr.mxu0 0.0
    %660 = vmatpush1.msra.mxu0 0.0
    %661 = vmatprep.subr.mxu0 0.0
    %662 = vmatpush1.msra.mxu0 0.0
    %663 = vmatprep.subr.mxu0 0.0
    %664 = vmatpush1.msra.mxu0 %v32
    %665 = vmatprep.subr.mxu0 0.0
    %666 = vmatpush1.msra.mxu0 %v31
    %667 = vmatprep.subr.mxu0 0.0
    %668 = vmatpush1.msra.mxu0 %v30
    %669 = vmatprep.subr.mxu0 0.0
    %670 = vmatpush1.msra.mxu0 %v29
    %671 = vmatprep.subr.mxu0 0.0
    %672 = vmatpush1.msra.mxu0 %v28
    %673 = vmatprep.subr.mxu0 0.0
    %674 = vmatpush1.msra.mxu0 %v27
    %675 = vmatprep.subr.mxu0 0.0
    %676 = vmatpush1.msra.mxu0 %v26
    %677 = vmatprep.subr.mxu0 0.0
    %678 = vmatpush1.msra.mxu0 %v25
    %679 = vmatprep.subr.mxu0 0.0
    %680 = vmatpush2.msra.mxu0 0.0
    %681 = vmatprep.subr.mxu0 0.0
    %682 = vmatpush2.msra.mxu0 0.0
    %683 = vmatprep.subr.mxu0 0.0
    %684 = vmatpush2.msra.mxu0 0.0
    %685 = vmatprep.subr.mxu0 0.0
    %686 = vmatpush2.msra.mxu0 0.0
    %687 = vmatprep.subr.mxu0 0.0
    %688 = vmatpush2.msra.mxu0 0.0
    %689 = vmatprep.subr.mxu0 0.0
    %690 = vmatpush2.msra.mxu0 0.0
    %691 = vmatprep.subr.mxu0 0.0
    %692 = vmatpush2.msra.mxu0 0.0
    %693 = vmatprep.subr.mxu0 0.0
    %694 = vmatpush2.msra.mxu0 0.0
    %695 = vmatprep.subr.mxu0 0.0
    %696 = vmatpush2.msra.mxu0 0.0
    %697 = vmatprep.subr.mxu0 0.0
    %698 = vmatpush2.msra.mxu0 0.0
    %699 = vmatprep.subr.mxu0 0.0
    %700 = vmatpush2.msra.mxu0 0.0
    %701 = vmatprep.subr.mxu0 0.0
    %702 = vmatpush2.msra.mxu0 0.0
    %703 = vmatprep.subr.mxu0 0.0
    %704 = vmatpush2.msra.mxu0 0.0
    %705 = vmatprep.subr.mxu0 0.0
    %706 = vmatpush2.msra.mxu0 0.0
    %707 = vmatprep.subr.mxu0 0.0
    %708 = vmatpush2.msra.mxu0 0.0
    %709 = vmatprep.subr.mxu0 0.0
    %710 = vmatpush2.msra.mxu0 0.0
    %711 = vmatprep.mubr.f32.mxu0 0.0
    %712 = vmatmul.mubr.f32.gmra.mxu0 %v645
    %v713 = vpop.f32.mrf.mxu0
    %v714 = vadd.f32 0.0, %v713
    %v715 = vpop.f32.mrf.mxu0
    %716 = vdwg.mxu0
    %v717 = vadd.f32 %v641, %v714
    %v718 = vrcp.pop %v717
    %v719 = vpack.c.bf16 %v718, %v718
    %v720 = vunpack.c.l.bf16 %v719
    %v721 = vsub.f32 %v718, %v720
    %v722 = vpack.c.bf16 %v721, %v721
    %v723 = vunpack.c.l.bf16 %v722
    %v724 = vsub.f32 %v721, %v723
    %v726 = vsel %vm39, %v723, 0
    %728 = vmatprep.subr.mxu0 0.0
    %729 = vmatpush1.msra.mxu0 0.0
    %730 = vmatprep.subr.mxu0 0.0
    %731 = vmatpush1.msra.mxu0 0.0
    %732 = vmatprep.subr.mxu0 0.0
    %733 = vmatpush1.msra.mxu0 0.0
    %734 = vmatprep.subr.mxu0 0.0
    %735 = vmatpush1.msra.mxu0 0.0
    %736 = vmatprep.subr.mxu0 0.0
    %737 = vmatpush1.msra.mxu0 0.0
    %738 = vmatprep.subr.mxu0 0.0
    %739 = vmatpush1.msra.mxu0 0.0
    %740 = vmatprep.subr.mxu0 0.0
    %741 = vmatpush1.msra.mxu0 0.0
    %742 = vmatprep.subr.mxu0 0.0
    %743 = vmatpush1.msra.mxu0 0.0
    %744 = vmatprep.subr.mxu0 0.0
    %745 = vmatpush1.msra.mxu0 0.0
    %746 = vmatprep.subr.mxu0 0.0
    %747 = vmatpush1.msra.mxu0 0.0
    %748 = vmatprep.subr.mxu0 0.0
    %749 = vmatpush1.msra.mxu0 0.0
    %750 = vmatprep.subr.mxu0 0.0
    %751 = vmatpush1.msra.mxu0 0.0
    %752 = vmatprep.subr.mxu0 0.0
    %753 = vmatpush1.msra.mxu0 0.0
    %754 = vmatprep.subr.mxu0 0.0
    %755 = vmatpush1.msra.mxu0 0.0
    %756 = vmatprep.subr.mxu0 0.0
    %757 = vmatpush1.msra.mxu0 0.0
    %758 = vmatprep.subr.mxu0 0.0
    %759 = vmatpush1.msra.mxu0 %v23
    %760 = vmatprep.subr.mxu0 0.0
    %761 = vmatpush2.msra.mxu0 0.0
    %762 = vmatprep.subr.mxu0 0.0
    %763 = vmatpush2.msra.mxu0 0.0
    %764 = vmatprep.subr.mxu0 0.0
    %765 = vmatpush2.msra.mxu0 0.0
    %766 = vmatprep.subr.mxu0 0.0
    %767 = vmatpush2.msra.mxu0 0.0
    %768 = vmatprep.subr.mxu0 0.0
    %769 = vmatpush2.msra.mxu0 0.0
    %770 = vmatprep.subr.mxu0 0.0
    %771 = vmatpush2.msra.mxu0 0.0
    %772 = vmatprep.subr.mxu0 0.0
    %773 = vmatpush2.msra.mxu0 0.0
    %774 = vmatprep.subr.mxu0 0.0
    %775 = vmatpush2.msra.mxu0 0.0
    %776 = vmatprep.subr.mxu0 0.0
    %777 = vmatpush2.msra.mxu0 0.0
    %778 = vmatprep.subr.mxu0 0.0
    %779 = vmatpush2.msra.mxu0 0.0
    %780 = vmatprep.subr.mxu0 0.0
    %781 = vmatpush2.msra.mxu0 0.0
    %782 = vmatprep.subr.mxu0 0.0
    %783 = vmatpush2.msra.mxu0 0.0
    %784 = vmatprep.subr.mxu0 0.0
    %785 = vmatpush2.msra.mxu0 0.0
    %786 = vmatprep.subr.mxu0 0.0
    %787 = vmatpush2.msra.mxu0 0.0
    %788 = vmatprep.subr.mxu0 0.0
    %789 = vmatpush2.msra.mxu0 0.0
    %790 = vmatprep.subr.mxu0 0.0
    %791 = vmatpush2.msra.mxu0 0.0
    %792 = vmatprep.mubr.f32.mxu0 0.0
    %793 = vmatmul.mubr.f32.gmra.mxu0 %v726
    %v794 = vpop.f32.mrf.mxu0
    %v795 = vadd.f32 0.0, %v794
    %v796 = vpop.f32.mrf.mxu0
    %797 = vdwg.mxu0
    %v799 = vsel %vm39, %v720, 0
    %801 = vmatprep.subr.mxu0 0.0
    %802 = vmatpush1.msra.mxu0 0.0
    %803 = vmatprep.subr.mxu0 0.0
    %804 = vmatpush1.msra.mxu0 0.0
    %805 = vmatprep.subr.mxu0 0.0
    %806 = vmatpush1.msra.mxu0 0.0
    %807 = vmatprep.subr.mxu0 0.0
    %808 = vmatpush1.msra.mxu0 0.0
    %809 = vmatprep.subr.mxu0 0.0
    %810 = vmatpush1.msra.mxu0 0.0
    %811 = vmatprep.subr.mxu0 0.0
    %812 = vmatpush1.msra.mxu0 0.0
    %813 = vmatprep.subr.mxu0 0.0
    %814 = vmatpush1.msra.mxu0 0.0
    %815 = vmatprep.subr.mxu0 0.0
    %816 = vmatpush1.msra.mxu0 0.0
    %817 = vmatprep.subr.mxu0 0.0
    %818 = vmatpush1.msra.mxu0 0.0
    %819 = vmatprep.subr.mxu0 0.0
    %820 = vmatpush1.msra.mxu0 0.0
    %821 = vmatprep.subr.mxu0 0.0
    %822 = vmatpush1.msra.mxu0 0.0
    %823 = vmatprep.subr.mxu0 0.0
    %824 = vmatpush1.msra.mxu0 0.0
    %825 = vmatprep.subr.mxu0 0.0
    %826 = vmatpush1.msra.mxu0 0.0
    %827 = vmatprep.subr.mxu0 0.0
    %828 = vmatpush1.msra.mxu0 0.0
    %829 = vmatprep.subr.mxu0 0.0
    %830 = vmatpush1.msra.mxu0 0.0
    %831 = vmatprep.subr.mxu0 0.0
    %832 = vmatpush1.msra.mxu0 %v23
    %833 = vmatprep.subr.mxu0 0.0
    %834 = vmatpush2.msra.mxu0 0.0
    %835 = vmatprep.subr.mxu0 0.0
    %836 = vmatpush2.msra.mxu0 0.0
    %837 = vmatprep.subr.mxu0 0.0
    %838 = vmatpush2.msra.mxu0 0.0
    %839 = vmatprep.subr.mxu0 0.0
    %840 = vmatpush2.msra.mxu0 0.0
    %841 = vmatprep.subr.mxu0 0.0
    %842 = vmatpush2.msra.mxu0 0.0
    %843 = vmatprep.subr.mxu0 0.0
    %844 = vmatpush2.msra.mxu0 0.0
    %845 = vmatprep.subr.mxu0 0.0
    %846 = vmatpush2.msra.mxu0 0.0
    %847 = vmatprep.subr.mxu0 0.0
    %848 = vmatpush2.msra.mxu0 0.0
    %849 = vmatprep.subr.mxu0 0.0
    %850 = vmatpush2.msra.mxu0 0.0
    %851 = vmatprep.subr.mxu0 0.0
    %852 = vmatpush2.msra.mxu0 0.0
    %853 = vmatprep.subr.mxu0 0.0
    %854 = vmatpush2.msra.mxu0 0.0
    %855 = vmatprep.subr.mxu0 0.0
    %856 = vmatpush2.msra.mxu0 0.0
    %857 = vmatprep.subr.mxu0 0.0
    %858 = vmatpush2.msra.mxu0 0.0
    %859 = vmatprep.subr.mxu0 0.0
    %860 = vmatpush2.msra.mxu0 0.0
    %861 = vmatprep.subr.mxu0 0.0
    %862 = vmatpush2.msra.mxu0 0.0
    %863 = vmatprep.subr.mxu0 0.0
    %864 = vmatpush2.msra.mxu0 0.0
    %865 = vmatprep.mubr.f32.mxu0 0.0
    %866 = vmatmul.mubr.f32.gmra.mxu0 %v799
    %v867 = vpop.f32.mrf.mxu0
    %v868 = vadd.f32 %v795, %v867
    %v869 = vpop.f32.mrf.mxu0
    %870 = vdwg.mxu0
    %v872 = vsel %vm39, %v724, 0
    %874 = vmatprep.subr.mxu0 0.0
    %875 = vmatpush1.msra.mxu0 0.0
    %876 = vmatprep.subr.mxu0 0.0
    %877 = vmatpush1.msra.mxu0 0.0
    %878 = vmatprep.subr.mxu0 0.0
    %879 = vmatpush1.msra.mxu0 0.0
    %880 = vmatprep.subr.mxu0 0.0
    %881 = vmatpush1.msra.mxu0 0.0
    %882 = vmatprep.subr.mxu0 0.0
    %883 = vmatpush1.msra.mxu0 0.0
    %884 = vmatprep.subr.mxu0 0.0
    %885 = vmatpush1.msra.mxu0 0.0
    %886 = vmatprep.subr.mxu0 0.0
    %887 = vmatpush1.msra.mxu0 0.0
    %888 = vmatprep.subr.mxu0 0.0
    %889 = vmatpush1.msra.mxu0 0.0
    %890 = vmatprep.subr.mxu0 0.0
    %891 = vmatpush1.msra.mxu0 0.0
    %892 = vmatprep.subr.mxu0 0.0
    %893 = vmatpush1.msra.mxu0 0.0
    %894 = vmatprep.subr.mxu0 0.0
    %895 = vmatpush1.msra.mxu0 0.0
    %896 = vmatprep.subr.mxu0 0.0
    %897 = vmatpush1.msra.mxu0 0.0
    %898 = vmatprep.subr.mxu0 0.0
    %899 = vmatpush1.msra.mxu0 0.0
    %900 = vmatprep.subr.mxu0 0.0
    %901 = vmatpush1.msra.mxu0 0.0
    %902 = vmatprep.subr.mxu0 0.0
    %903 = vmatpush1.msra.mxu0 0.0
    %904 = vmatprep.subr.mxu0 0.0
    %905 = vmatpush1.msra.mxu0 %v23
    %906 = vmatprep.subr.mxu0 0.0
    %907 = vmatpush2.msra.mxu0 0.0
    %908 = vmatprep.subr.mxu0 0.0
    %909 = vmatpush2.msra.mxu0 0.0
    %910 = vmatprep.subr.mxu0 0.0
    %911 = vmatpush2.msra.mxu0 0.0
    %912 = vmatprep.subr.mxu0 0.0
    %913 = vmatpush2.msra.mxu0 0.0
    %914 = vmatprep.subr.mxu0 0.0
    %915 = vmatpush2.msra.mxu0 0.0
    %916 = vmatprep.subr.mxu0 0.0
    %917 = vmatpush2.msra.mxu0 0.0
    %918 = vmatprep.subr.mxu0 0.0
    %919 = vmatpush2.msra.mxu0 0.0
    %920 = vmatprep.subr.mxu0 0.0
    %921 = vmatpush2.msra.mxu0 0.0
    %922 = vmatprep.subr.mxu0 0.0
    %923 = vmatpush2.msra.mxu0 0.0
    %924 = vmatprep.subr.mxu0 0.0
    %925 = vmatpush2.msra.mxu0 0.0
    %926 = vmatprep.subr.mxu0 0.0
    %927 = vmatpush2.msra.mxu0 0.0
    %928 = vmatprep.subr.mxu0 0.0
    %929 = vmatpush2.msra.mxu0 0.0
    %930 = vmatprep.subr.mxu0 0.0
    %931 = vmatpush2.msra.mxu0 0.0
    %932 = vmatprep.subr.mxu0 0.0
    %933 = vmatpush2.msra.mxu0 0.0
    %934 = vmatprep.subr.mxu0 0.0
    %935 = vmatpush2.msra.mxu0 0.0
    %936 = vmatprep.subr.mxu0 0.0
    %937 = vmatpush2.msra.mxu0 0.0
    %938 = vmatprep.mubr.f32.mxu0 0.0
    %939 = vmatmul.mubr.f32.gmra.mxu0 %v872
    %v940 = vpop.f32.mrf.mxu0
    %v941 = vadd.f32 0.0, %v940
    %v942 = vpop.f32.mrf.mxu0
    %943 = vdwg.mxu0
    %v944 = vadd.f32 %v868, %v941
    %v945 = vmul.f32 %v490, %v944
    %vm946 = vcmask 517120
    %947 = vst.msk [vmem:[#allocation2] sm:$0x3] %vm946, %v945
    // Predicated region
    $region22: #{tpu_custom_call.1} parent=1 // pred_check
      _
    $region23: #{tpu_custom_call.1} parent=1 // pred_check_branch
      %949 = sbr.rel (0) target = $region25
    $region24: #{tpu_custom_call.1} parent=1 // pred_region
      %s951 = ssub.s32 32, 32
      %952 = vsyncadd [#allocation3], %s951
      %s954 = sshll.u32 [#allocation2], 4
      %s955 = int_to_ptr.vmem [resolvable:$true] %s954
      %957 = dma.vmem_to_hbm [thread:$0]  %s955, 32, %s5, [#allocation3]
    $region25: #{tpu_custom_call.1} parent=1 // pred_fallthru
      _
    // Predicated region
    $region26: #{tpu_custom_call.1} parent=1 // pred_check
      _
    $region27: #{tpu_custom_call.1} parent=1 // pred_check_branch
      %959 = sbr.rel (0) target = $region29
    $region28: #{tpu_custom_call.1} parent=1 // pred_region
      %960 = dma.done [#allocation3], 32
    $region29: #{tpu_custom_call.1} parent=1 // pred_fallthru
      _
    %961 = vsyncpa [#allocation3], 1

</llo_original>
